<compile_context>
chip_gen: v5e
topology: v5e:2x2
jax: 0.10.0
libtpu: 0.0.40
codegen_flags: <defaults>
</compile_context>

<pallas_src>
import functools
import math

import jax
import jax.numpy as jnp
from jax.experimental import pallas as pl
from jax.experimental.pallas import tpu as pltpu


def _round_up(n, m):
    return pl.cdiv(n, m) * m


def _gelu(x, approximate):
    if approximate:
        # tanh approximation -> transcendental goes to the EUP slot (nearly free
        # next to the MXU on v6e/v7x); small numeric delta vs exact erf.
        return jax.nn.gelu(x, approximate=True)
    # Exact erf form == PyTorch F.gelu default.
    return 0.5 * x * (1.0 + jax.lax.erf(x * 0.7071067811865476))


def _tpu_info():
    """Best-effort (per-core VMEM bytes, is_v5, is_v7)."""
    kind = ""
    try:
        kind = jax.devices()[0].device_kind.lower()
    except Exception:
        pass
    is_v5 = "v5" in kind
    is_v7 = ("v7" in kind) or ("tpu7" in kind)
    vmem = None
    try:
        vmem = int(pltpu.get_tpu_info().vmem_capacity_bytes)
    except Exception:
        vmem = None
    if vmem is None:
        # 128 MiB on v5e/v6e; conservative 64 MiB when unknown.
        vmem = (128 << 20) if (is_v5 or "v6" in kind) else (64 << 20)
    if is_v7:
        vmem = min(vmem, 64 << 20)   # 64 MiB per TensorCore on v7x
    return vmem, is_v5, is_v7


def _largest_divisor_tile(total, target, multiple):
    """Largest divisor of `total` that is a multiple of `multiple` and <= target."""
    best = None
    d = multiple
    limit = min(total, target)
    while d <= limit:
        if total % d == 0:
            best = d
        d += multiple
    return best


# --------------------------------------------------------------------------
# Kernels
# --------------------------------------------------------------------------
def _ffn_kernel_full(x_ref, w1_ref, b1_ref, w2_ref, b2_ref, o_ref, *,
                     approximate_gelu, compute_dtype):
    # Full feedforward dim resident in VMEM: 1-D grid over row tiles.
    # x_ref: (tm, H) native dtype  w1_ref: (H, F) bf16  b1_ref: (1, F) f32
    # w2_ref: (F, H) bf16          b2_ref: (1, H) f32   o_ref: (tm, H)
    x = x_ref[...].astype(compute_dtype)                 # cast in-kernel (free VPU)
    h = jnp.dot(x, w1_ref[...], preferred_element_type=jnp.float32)
    h = _gelu(h + b1_ref[...], approximate_gelu)         # f32 bias add + GELU
    # dropout (p=0.1) == identity in eval/inference mode.
    out = jnp.dot(h.astype(compute_dtype), w2_ref[...],
                  preferred_element_type=jnp.float32)
    o_ref[...] = (out + b2_ref[...]).astype(o_ref.dtype)


def _ffn_kernel_tiled(x_ref, w1_ref, b1_ref, w2_ref, b2_ref, o_ref, acc_ref, *,
                      approximate_gelu, compute_dtype):
    # 2-D grid: (row tiles "parallel", F tiles "arbitrary"/innermost reduction).
    f = pl.program_id(1)

    @pl.when(f == 0)
    def _():
        acc_ref[...] = jnp.zeros_like(acc_ref)

    x = x_ref[...].astype(compute_dtype)
    h = jnp.dot(x, w1_ref[...], preferred_element_type=jnp.float32)
    h = _gelu(h + b1_ref[...], approximate_gelu)
    # dropout (p=0.1) == identity in eval/inference mode.
    acc_ref[...] += jnp.dot(h.astype(compute_dtype), w2_ref[...],
                            preferred_element_type=jnp.float32)

    @pl.when(f == pl.num_programs(1) - 1)
    def _():
        o_ref[...] = (acc_ref[...] + b2_ref[...]).astype(o_ref.dtype)


# --------------------------------------------------------------------------
# Wrapper
# --------------------------------------------------------------------------
def feed_forward_network(x, w1, b1, w2, b2, *, tm=None, tf=None,
                         compute_dtype=jnp.bfloat16, approximate_gelu=True):
    """x: (batch, seq, hidden). w1: (H, F), b1: (F,), w2: (F, H), b2: (H,).

    Weights are (in_features, out_features): the kernel computes x @ W + b,
    which equals PyTorch's x @ W.T with its (out, in) weight layout.
    Use compute_dtype=jnp.float32 for exact-parity checks (bf16 MXU inputs give
    ~1e-2 level error vs an f32 reference).
    """
    B, S, H = x.shape
    H_in, F_dim = w1.shape
    assert H_in == H and w2.shape == (F_dim, H)
    assert b1.shape == (F_dim,) and b2.shape == (H,)
    out_dtype = x.dtype
    M = B * S

    vmem_cap, is_v5, is_v7 = _tpu_info()
    x_itm = jnp.dtype(x.dtype).itemsize
    w_itm = jnp.dtype(compute_dtype).itemsize
    out_itm = jnp.dtype(out_dtype).itemsize
    lane_mult = 128 if is_v5 else 256         # MXU N-dim alignment (256 on v6e/v7x)

    # --- Row tile: large enough to amortize weight DMA + per-step overhead. ---
    if tm is None:
        tm = 512 if is_v7 else 1024
    tm_eff = min(tm, _round_up(M, 16))        # 16: one bf16 vreg packs 16 sublanes
    if is_v7:
        # Keep >=2 row tiles so the "parallel" M axis feeds both TensorCores.
        while tm_eff > 256 and pl.cdiv(M, tm_eff) < 2:
            tm_eff = max(256, tm_eff // 2)

    # --- Path decision: full-F weight residency vs F-tiled reduction. ---
    def _full_vmem_bytes(tm_):
        return (2 * 2 * H * F_dim * w_itm             # W1 + W2 (double-buffered)
                + 2 * tm_ * H * (x_itm + out_itm)     # x / out tiles
                + 2 * (F_dim + H) * 4                 # biases
                + 2 * tm_ * F_dim * 4)                # f32 intermediate h headroom

    use_full_f = _full_vmem_bytes(tm_eff) <= int(0.70 * vmem_cap)

    tf_eff = F_dim
    if not use_full_f:
        if tf is None:
            tf = 512 if is_v5 else 1024
        tf_eff = _largest_divisor_tile(F_dim, tf, lane_mult)
        if tf_eff is None:
            tf_eff = _largest_divisor_tile(F_dim, F_dim, 128)
        if tf_eff is None:
            tf_eff = F_dim                             # last resort (odd tiny F)

        def _tiled_vmem_bytes(tm_, tf_):
            return (2 * tm_ * H * (x_itm + out_itm)
                    + 2 * (H * tf_ + tf_ * H) * w_itm  # W1 / W2 tiles (dbl-buffered)
                    + 2 * (tf_ + H) * 4                # bias tiles
                    + tm_ * H * 4                      # f32 accumulator scratch
                    + 2 * tm_ * tf_ * 4)               # f32 intermediate h headroom

        budget = int(0.85 * vmem_cap)                  # 64 MiB-aware on v7x
        while _tiled_vmem_bytes(tm_eff, tf_eff) > budget and tm_eff > 256:
            tm_eff = max(256, tm_eff // 2)
        while _tiled_vmem_bytes(tm_eff, tf_eff) > budget:
            smaller = _largest_divisor_tile(F_dim, tf_eff // 2, 128)
            if smaller is None or smaller >= tf_eff:
                break
            tf_eff = smaller

    M_pad = _round_up(M, tm_eff)
    n_m = M_pad // tm_eff
    n_f = F_dim // tf_eff

    # --- Prepare operands. x stays in its native dtype (cast happens in-kernel);
    # weights are cast only if needed (pre-convert once outside jit in prod). ---
    x2d = x.reshape(M, H)
    if M_pad != M:
        # Padded rows produce GELU(b1) @ W2 + b2 garbage that is sliced off
        # below (out[:M]) -- do not remove that slice.
        x2d = jnp.pad(x2d, ((0, M_pad - M), (0, 0)))
    w1c = w1 if w1.dtype == compute_dtype else w1.astype(compute_dtype)
    w2c = w2 if w2.dtype == compute_dtype else w2.astype(compute_dtype)
    b1_2d = b1.reshape(1, F_dim).astype(jnp.float32)
    b2_2d = b2.reshape(1, H).astype(jnp.float32)

    flops = 4 * M_pad * H * F_dim

    if use_full_f:
        # Weights are DMA'd once for the whole kernel (constant block index).
        bytes_accessed = (M_pad * H * (x_itm + out_itm)
                          + 2 * H * F_dim * w_itm
                          + (F_dim + H) * 4)
        vmem_limit = int(min(max(_full_vmem_bytes(tm_eff) * 1.2, 32 << 20),
                             0.92 * vmem_cap))
        kernel = functools.partial(_ffn_kernel_full,
                                   approximate_gelu=approximate_gelu,
                                   compute_dtype=compute_dtype)
        out = pl.pallas_call(
            kernel,
            out_shape=jax.ShapeDtypeStruct((M_pad, H), out_dtype),
            grid_spec=pltpu.PrefetchScalarGridSpec(
                num_scalar_prefetch=0,
                grid=(n_m,),
                in_specs=[
                    pl.BlockSpec((tm_eff, H), lambda i: (i, 0)),   # x rows
                    pl.BlockSpec((H, F_dim), lambda i: (0, 0)),    # W1 (resident)
                    pl.BlockSpec((1, F_dim), lambda i: (0, 0)),    # b1
                    pl.BlockSpec((F_dim, H), lambda i: (0, 0)),    # W2 (resident)
                    pl.BlockSpec((1, H), lambda i: (0, 0)),        # b2
                ],
                out_specs=pl.BlockSpec((tm_eff, H), lambda i: (i, 0)),
            ),
            compiler_params=pltpu.CompilerParams(
                dimension_semantics=("parallel",),
                vmem_limit_bytes=vmem_limit),
            cost_estimate=pl.CostEstimate(flops=flops,
                                          transcendentals=M_pad * F_dim,
                                          bytes_accessed=int(bytes_accessed)),
        )(x2d, w1c, b1_2d, w2c, b2_2d)
        return out[:M].reshape(B, S, H)

    # --- F-tiled path (weights too large for VMEM residency, e.g. v7x). ---
    # TODO(synk): if profiles show exposed weight DMA on v5e, add
    # pipeline_mode=pl.Buffered(3) to the W1/W2 specs (and budget the buffer).
    bytes_accessed = (M_pad * H * (x_itm + out_itm)
                      + n_m * 2 * H * F_dim * w_itm     # W1+W2 re-read per M tile
                      + (F_dim + H) * 4)
    vmem_needed = (2 * tm_eff * H * (x_itm + out_itm)
                   + 2 * (H * tf_eff + tf_eff * H) * w_itm
                   + 2 * (tf_eff + H) * 4
                   + tm_eff * H * 4
                   + 2 * tm_eff * tf_eff * 4)
    vmem_limit = int(min(max(vmem_needed * 1.2 + (2 << 20), 32 << 20),
                         0.92 * vmem_cap))
    kernel = functools.partial(_ffn_kernel_tiled,
                               approximate_gelu=approximate_gelu,
                               compute_dtype=compute_dtype)
    out = pl.pallas_call(
        kernel,
        out_shape=jax.ShapeDtypeStruct((M_pad, H), out_dtype),
        grid_spec=pltpu.PrefetchScalarGridSpec(
            num_scalar_prefetch=0,
            grid=(n_m, n_f),
            in_specs=[
                pl.BlockSpec((tm_eff, H), lambda i, f: (i, 0)),       # x rows
                pl.BlockSpec((H, tf_eff), lambda i, f: (0, f)),       # W1 F-slice
                pl.BlockSpec((1, tf_eff), lambda i, f: (0, f)),       # b1 F-slice
                pl.BlockSpec((tf_eff, H), lambda i, f: (f, 0)),       # W2 F-slice
                pl.BlockSpec((1, H), lambda i, f: (0, 0)),            # b2
            ],
            out_specs=pl.BlockSpec((tm_eff, H), lambda i, f: (i, 0)),
            scratch_shapes=[pltpu.VMEM((tm_eff, H), jnp.float32)],    # accumulator
        ),
        compiler_params=pltpu.CompilerParams(
            dimension_semantics=("parallel", "arbitrary"),
            vmem_limit_bytes=vmem_limit),
        cost_estimate=pl.CostEstimate(flops=flops,
                                      transcendentals=M_pad * F_dim,
                                      bytes_accessed=int(bytes_accessed)),
    )(x2d, w1c, b1_2d, w2c, b2_2d)
    return out[:M].reshape(B, S, H)


def _init_params(key, hidden_size, feedforward_dim, dtype=jnp.float32):
    """Deterministic init mimicking nn.Linear's kaiming-uniform defaults."""
    k1, k2, k3, k4 = jax.random.split(key, 4)
    bound1 = 1.0 / math.sqrt(hidden_size)
    bound2 = 1.0 / math.sqrt(feedforward_dim)
    # stored as (in_features, out_features)
    w1 = jax.random.uniform(k1, (hidden_size, feedforward_dim), dtype,
                            minval=-bound1, maxval=bound1)
    b1 = jax.random.uniform(k2, (feedforward_dim,), dtype,
                            minval=-bound1, maxval=bound1)
    w2 = jax.random.uniform(k3, (feedforward_dim, hidden_size), dtype,
                            minval=-bound2, maxval=bound2)
    b2 = jax.random.uniform(k4, (hidden_size,), dtype,
                            minval=-bound2, maxval=bound2)
    return w1, b1, w2, b2


if __name__ == "__main__":
    batch, seq, hidden_size, feedforward_dim = 2, 8, 32, 64

    key = jax.random.PRNGKey(0)
    kx, kp = jax.random.split(key)
    x = jax.random.normal(kx, (batch, seq, hidden_size), dtype=jnp.float32)
    w1, b1, w2, b2 = _init_params(kp, hidden_size, feedforward_dim)

    y = feed_forward_network(x, w1, b1, w2, b2)   # default: tanh-GELU fast path
    y = jax.block_until_ready(y)
    assert y.shape == x.shape

    # Pure-JAX reference (eval-mode dropout = identity), matching the kernel's
    # tanh-GELU fast path; tolerance absorbs bf16 MXU inputs (f32 accumulation).
    ref_tanh = jax.nn.gelu(x @ w1 + b1, approximate=True) @ w2 + b2
    assert jnp.allclose(y, ref_tanh, atol=2e-2, rtol=2e-2), "mismatch vs reference"

    # Sanity vs the exact-erf PyTorch F.gelu form (looser: tanh-vs-erf delta).
    ref_erf = jax.nn.gelu(x @ w1 + b1, approximate=False) @ w2 + b2
    assert jnp.allclose(y, ref_erf, atol=5e-2, rtol=5e-2), "mismatch vs erf reference"

    print("KERNEL_OK")
</pallas_src>

<mosaic_0001>
module attributes {stable_mosaic.version = 11 : i64} {
  func.func @_ffn_kernel_full(%arg0: i32, %arg1: memref<16x32xf32, #tpu.memory_space<vmem>>, %arg2: memref<32x64xbf16, #tpu.memory_space<vmem>>, %arg3: memref<1x64xf32, #tpu.memory_space<vmem>>, %arg4: memref<64x32xbf16, #tpu.memory_space<vmem>>, %arg5: memref<1x32xf32, #tpu.memory_space<vmem>>, %arg6: memref<16x32xf32, #tpu.memory_space<vmem>>) attributes {dimension_semantics = [#tpu.dimension_semantics<parallel>], iteration_bounds = array<i64: 1>, scalar_prefetch = 0 : i64, scratch_operands = 0 : i64, tpu.core_type = #tpu.core_type<tc>, window_params = [{transform_indices = @transform_0, window_bounds = array<i64: 16, 32>}, {pipeline_mode = #tpu.pipeline_mode<synchronous>, transform_indices = @transform_1, window_bounds = array<i64: 32, 64>}, {pipeline_mode = #tpu.pipeline_mode<synchronous>, transform_indices = @transform_2, window_bounds = array<i64: 1, 64>}, {pipeline_mode = #tpu.pipeline_mode<synchronous>, transform_indices = @transform_3, window_bounds = array<i64: 64, 32>}, {pipeline_mode = #tpu.pipeline_mode<synchronous>, transform_indices = @transform_4, window_bounds = array<i64: 1, 32>}, {transform_indices = @transform_5, window_bounds = array<i64: 16, 32>}]} {
    %c0 = arith.constant 0 : index
    %c0_0 = arith.constant 0 : index
    %0 = vector.load %arg1[%c0, %c0_0] : memref<16x32xf32, #tpu.memory_space<vmem>>, vector<16x32xf32>
    %1 = arith.truncf %0 : vector<16x32xf32> to vector<16x32xbf16>
    %c0_1 = arith.constant 0 : index
    %c0_2 = arith.constant 0 : index
    %2 = vector.load %arg2[%c0_1, %c0_2] : memref<32x64xbf16, #tpu.memory_space<vmem>>, vector<32x64xbf16>
    %cst = arith.constant dense<0.000000e+00> : vector<16x64xf32>
    %3 = tpu.matmul %1, %2, %cst {dimension_numbers = #tpu.dot_dimension_numbers<[1], [0], [0], [1], [0, 0, 1, 1], [], []>} : vector<16x32xbf16>, vector<32x64xbf16>, vector<16x64xf32> -> vector<16x64xf32>
    %c0_3 = arith.constant 0 : index
    %c0_4 = arith.constant 0 : index
    %4 = vector.load %arg3[%c0_3, %c0_4] : memref<1x64xf32, #tpu.memory_space<vmem>>, vector<1x64xf32>
    %5 = vector.broadcast %4 : vector<1x64xf32> to vector<16x64xf32>
    %6 = arith.addf %3, %5 : vector<16x64xf32>
    %7 = arith.mulf %6, %6 : vector<16x64xf32>
    %8 = arith.mulf %6, %7 : vector<16x64xf32>
    %cst_5 = arith.constant 4.471500e-02 : f32
    %9 = vector.broadcast %cst_5 : f32 to vector<16x64xf32>
    %10 = arith.mulf %9, %8 : vector<16x64xf32>
    %11 = arith.addf %6, %10 : vector<16x64xf32>
    %cst_6 = arith.constant 0.797884583 : f32
    %12 = vector.broadcast %cst_6 : f32 to vector<16x64xf32>
    %13 = arith.mulf %12, %11 : vector<16x64xf32>
    %14 = math.tanh %13 : vector<16x64xf32>
    %cst_7 = arith.constant 1.000000e+00 : f32
    %15 = vector.broadcast %cst_7 : f32 to vector<16x64xf32>
    %16 = arith.addf %15, %14 : vector<16x64xf32>
    %cst_8 = arith.constant 5.000000e-01 : f32
    %17 = vector.broadcast %cst_8 : f32 to vector<16x64xf32>
    %18 = arith.mulf %17, %16 : vector<16x64xf32>
    %19 = arith.mulf %6, %18 : vector<16x64xf32>
    %20 = arith.truncf %19 : vector<16x64xf32> to vector<16x64xbf16>
    %c0_9 = arith.constant 0 : index
    %c0_10 = arith.constant 0 : index
    %21 = vector.load %arg4[%c0_9, %c0_10] : memref<64x32xbf16, #tpu.memory_space<vmem>>, vector<64x32xbf16>
    %cst_11 = arith.constant dense<0.000000e+00> : vector<16x32xf32>
    %22 = tpu.matmul %20, %21, %cst_11 {dimension_numbers = #tpu.dot_dimension_numbers<[1], [0], [0], [1], [0, 0, 1, 1], [], []>} : vector<16x64xbf16>, vector<64x32xbf16>, vector<16x32xf32> -> vector<16x32xf32>
    %c0_12 = arith.constant 0 : index
    %c0_13 = arith.constant 0 : index
    %23 = vector.load %arg5[%c0_12, %c0_13] : memref<1x32xf32, #tpu.memory_space<vmem>>, vector<1x32xf32>
    %24 = vector.broadcast %23 : vector<1x32xf32> to vector<16x32xf32>
    %25 = arith.addf %22, %24 : vector<16x32xf32>
    %c0_14 = arith.constant 0 : index
    %c0_15 = arith.constant 0 : index
    %26 = vector.load %arg6[%c0_14, %c0_15] : memref<16x32xf32, #tpu.memory_space<vmem>>, vector<16x32xf32>
    tpu.vector_store %arg6[%c0_14, %c0_15], %25 {strides = array<i32>} : memref<16x32xf32, #tpu.memory_space<vmem>>, vector<16x32xf32>,
    return
  }
  func.func @transform_0(%arg0: i32) -> (i32, i32) {
    %c0_i32 = arith.constant 0 : i32
    %c0_i32_0 = arith.constant 0 : i32
    return %arg0, %c0_i32 : i32, i32
  }
  func.func @transform_1(%arg0: i32) -> (i32, i32) {
    %c0_i32 = arith.constant 0 : i32
    %c0_i32_0 = arith.constant 0 : i32
    %c0_i32_1 = arith.constant 0 : i32
    return %c0_i32, %c0_i32_0 : i32, i32
  }
  func.func @transform_2(%arg0: i32) -> (i32, i32) {
    %c0_i32 = arith.constant 0 : i32
    %c0_i32_0 = arith.constant 0 : i32
    %c0_i32_1 = arith.constant 0 : i32
    return %c0_i32, %c0_i32_0 : i32, i32
  }
  func.func @transform_3(%arg0: i32) -> (i32, i32) {
    %c0_i32 = arith.constant 0 : i32
    %c0_i32_0 = arith.constant 0 : i32
    %c0_i32_1 = arith.constant 0 : i32
    return %c0_i32, %c0_i32_0 : i32, i32
  }
  func.func @transform_4(%arg0: i32) -> (i32, i32) {
    %c0_i32 = arith.constant 0 : i32
    %c0_i32_0 = arith.constant 0 : i32
    %c0_i32_1 = arith.constant 0 : i32
    return %c0_i32, %c0_i32_0 : i32, i32
  }
  func.func @transform_5(%arg0: i32) -> (i32, i32) {
    %c0_i32 = arith.constant 0 : i32
    %c0_i32_0 = arith.constant 0 : i32
    return %arg0, %c0_i32 : i32, i32
  }
}

</mosaic_0001>

<llo_original>
// kernel: tpu_custom_call.1
$region0: #{tpu_custom_call.1}
  #allocation0 [shape = 'u32[]', space=smem, size = 0x4, offset = 0x4, fixed_abs, tag = 'smem constant byte address 0x4 - core index']
  #allocation1 [shape = 'u32[72,128]{1,0:T(1,128)}', space=vmem, size = 0x9000, scoped, tag = 'internal scratch']
  %s0 = inlined_call_operand.vmem [shape: f32[16,32], index: 0, kind: input, shape index: {}]
  %s1 = inlined_call_operand.vmem [shape: bf16[32,64], index: 1, kind: input, shape index: {}]
  %s2 = inlined_call_operand.vmem [shape: f32[1,64], index: 2, kind: input, shape index: {}]
  %s3 = inlined_call_operand.vmem [shape: bf16[64,32], index: 3, kind: input, shape index: {}]
  %s4 = inlined_call_operand.vmem [shape: f32[1,32], index: 4, kind: input, shape index: {}]
  %s5 = inlined_call_operand.hbm [shape: f32[16,32], index: 5, kind: output, shape index: {}]
  %s6 = sld [smem:[#allocation0]]
  $region30: #{tpu_custom_call.1} parent=0
    _
  %s8 = ssub.s32 1, %s6
  %s9 = scalar_select 0, %s8, %s6
  $region1: #{tpu_custom_call.1} parent=0
    #allocation2 [shape = 'u8[8192]{0}', space=vmem, size = 0x2000, scoped, tag = 'output window, operand 0, single buffered']
    #allocation3 [shape = 's32[1]{0}', space=sflag, size = 0x4, scoped, tag = 'scoped memory for tpu_custom_call.1']
    %10 = vsyncpa [#allocation3], 0
    // Predicated region
    $region2: #{tpu_custom_call.1} parent=1 // pred_check
      _
    $region3: #{tpu_custom_call.1} parent=1 // pred_check_branch
      %12 = sbr.rel (0) target = $region5
    $region4: #{tpu_custom_call.1} parent=1 // pred_region
      _
    $region5: #{tpu_custom_call.1} parent=1 // pred_fallthru
      _
    // Predicated region
    $region6: #{tpu_custom_call.1} parent=1 // pred_check
      _
    $region7: #{tpu_custom_call.1} parent=1 // pred_check_branch
      %14 = sbr.rel (0) target = $region9
    $region8: #{tpu_custom_call.1} parent=1 // pred_region
      _
    $region9: #{tpu_custom_call.1} parent=1 // pred_fallthru
      _
    // Predicated region
    $region10: #{tpu_custom_call.1} parent=1 // pred_check
      _
    $region11: #{tpu_custom_call.1} parent=1 // pred_check_branch
      %16 = sbr.rel (0) target = $region13
    $region12: #{tpu_custom_call.1} parent=1 // pred_region
      _
    $region13: #{tpu_custom_call.1} parent=1 // pred_fallthru
      _
    // Predicated region
    $region14: #{tpu_custom_call.1} parent=1 // pred_check
      _
    $region15: #{tpu_custom_call.1} parent=1 // pred_check_branch
      %18 = sbr.rel (0) target = $region17
    $region16: #{tpu_custom_call.1} parent=1 // pred_region
      _
    $region17: #{tpu_custom_call.1} parent=1 // pred_fallthru
      _
    // Predicated region
    $region18: #{tpu_custom_call.1} parent=1 // pred_check
      _
    $region19: #{tpu_custom_call.1} parent=1 // pred_check_branch
      %20 = sbr.rel (0) target = $region21
    $region20: #{tpu_custom_call.1} parent=1 // pred_region
      _
    $region21: #{tpu_custom_call.1} parent=1 // pred_fallthru
      _
    %v22 = vld [vmem:[%s0] sm:$0xff]
    %v23 = vld [vmem:[%s0 + $0x8] sm:$0xff]
    %v24 = vpack.c.bf16 %v23, %v22
    %v25 = vld [vmem:[%s1] sm:$0xf]
    %v26 = vld [vmem:[%s1 + $0x4] sm:$0xf]
    %v27 = vld [vmem:[%s1 + $0x8] sm:$0xf]
    %v28 = vld [vmem:[%s1 + $0xc] sm:$0xf]
    %v29 = vld [vmem:[%s2] sm:$0x1]
    %v31 = vperm.slane %v29, 0
    %v37 = vunpack.c.l.b16 %v25
    %v38 = vunpack.c.l.b16 %v26
    %v39 = vunpack.c.l.b16 %v27
    %v40 = vunpack.c.l.b16 %v28
    %v41 = vpack.c.b16 %v38, %v37
    %v42 = vpack.c.b16 %v40, %v39
    %vm45 = vcmask 261120
    %v47 = vsel %vm45, %v24, 0
    %49 = vmatpush.bf16.msra.mxu0 0
    %50 = vmatpush.bf16.msra.mxu0 0
    %51 = vmatpush.bf16.msra.mxu0 0
    %52 = vmatpush.bf16.msra.mxu0 0
    %53 = vmatpush.bf16.msra.mxu0 0
    %54 = vmatpush.bf16.msra.mxu0 0
    %55 = vmatpush.bf16.msra.mxu0 %v42
    %56 = vmatpush.bf16.msra.mxu0 %v41
    %57 = vmatmul.bf16.gmra.mxu0 %v47
    %v58 = vpop.f32.mrf.mxu0
    %v59 = vadd.f32 %v31, %v58
    %v60 = vpop.f32.mrf.mxu0
    %v61 = vadd.f32 %v31, %v60
    %62 = vdwg.mxu0
    %v63 = vmul.f32 %v59, %v59
    %v64 = vmul.f32 %v61, %v61
    %v65 = vmul.f32 %v59, %v63
    %v66 = vmul.f32 %v61, %v64
    %v67 = vmul.f32 %v65, 0.044715
    %v68 = vmul.f32 %v66, 0.044715
    %v69 = vadd.f32 %v59, %v67
    %v70 = vadd.f32 %v61, %v68
    %v71 = vmul.f32 %v69, 0.7978846
    %v72 = vmul.f32 %v70, 0.7978846
    %v73 = vtanh.pop %v71
    %v74 = vtanh.pop %v72
    %v75 = vadd.f32 %v73, 1.0
    %v76 = vadd.f32 %v74, 1.0
    %v77 = vmul.f32 %v75, 0.5
    %v78 = vmul.f32 %v76, 0.5
    %v79 = vmul.f32 %v59, %v77
    %v80 = vmul.f32 %v61, %v78
    %v81 = vpack.c.bf16 %v80, %v79
    %v82 = vld [vmem:[%s3] sm:$0xf]
    %v83 = vld [vmem:[%s3 + $0x4] sm:$0xf]
    %v84 = vld [vmem:[%s3 + $0x8] sm:$0xf]
    %v85 = vld [vmem:[%s3 + $0xc] sm:$0xf]
    %v86 = vld [vmem:[%s3 + $0x10] sm:$0xf]
    %v87 = vld [vmem:[%s3 + $0x14] sm:$0xf]
    %v88 = vld [vmem:[%s3 + $0x18] sm:$0xf]
    %v89 = vld [vmem:[%s3 + $0x1c] sm:$0xf]
    %v90 = vld [vmem:[%s4] sm:$0x1]
    %v92 = vperm.slane %v90, 0
    %v102 = vunpack.c.l.b16 %v82
    %v103 = vunpack.c.l.b16 %v83
    %v104 = vunpack.c.l.b16 %v84
    %v105 = vunpack.c.l.b16 %v85
    %v106 = vunpack.c.l.b16 %v86
    %v107 = vunpack.c.l.b16 %v87
    %v108 = vunpack.c.l.b16 %v88
    %v109 = vunpack.c.l.b16 %v89
    %v110 = vpack.c.b16 %v103, %v102
    %v111 = vpack.c.b16 %v105, %v104
    %v112 = vpack.c.b16 %v107, %v106
    %v113 = vpack.c.b16 %v109, %v108
    %vm118 = vcmask 523264
    %v120 = vsel %vm118, %v81, 0
    %122 = vmatpush.bf16.msra.mxu0 0
    %123 = vmatpush.bf16.msra.mxu0 0
    %124 = vmatpush.bf16.msra.mxu0 0
    %125 = vmatpush.bf16.msra.mxu0 0
    %126 = vmatpush.bf16.msra.mxu0 %v113
    %127 = vmatpush.bf16.msra.mxu0 %v112
    %128 = vmatpush.bf16.msra.mxu0 %v111
    %129 = vmatpush.bf16.msra.mxu0 %v110
    %130 = vmatmul.bf16.gmra.mxu0 %v120
    %v131 = vpop.f32.mrf.mxu0
    %v132 = vadd.f32 %v92, %v131
    %v133 = vpop.f32.mrf.mxu0
    %v134 = vadd.f32 %v92, %v133
    %135 = vdwg.mxu0
    %136 = vst.msk [vmem:[#allocation2] sm:$0xff] %vm45, %v132
    %137 = vst.msk [vmem:[#allocation2 + $0x8] sm:$0xff] %vm45, %v134
    // Predicated region
    $region22: #{tpu_custom_call.1} parent=1 // pred_check
      _
    $region23: #{tpu_custom_call.1} parent=1 // pred_check_branch
      %139 = sbr.rel (0) target = $region25
    $region24: #{tpu_custom_call.1} parent=1 // pred_region
      %141 = vsyncadd [#allocation3], 0
      %s142 = sshll.u32 [#allocation2], 4
      %s143 = int_to_ptr.vmem [resolvable:$true] %s142
      %s144 = sshll.u32 %s5, 4
      %s145 = int_to_ptr.hbm [resolvable:$true] %s144
      %150 = dma.vmem_to_hbm [thread:$0]  %s143, 256, %s145, [#allocation3], 128, 128, 8
    $region25: #{tpu_custom_call.1} parent=1 // pred_fallthru
      _
    // Predicated region
    $region26: #{tpu_custom_call.1} parent=1 // pred_check
      _
    $region27: #{tpu_custom_call.1} parent=1 // pred_check_branch
      %152 = sbr.rel (0) target = $region29
    $region28: #{tpu_custom_call.1} parent=1 // pred_region
      %154 = dma.done [#allocation3], 256
    $region29: #{tpu_custom_call.1} parent=1 // pred_fallthru
      _
    %155 = vsyncpa [#allocation3], 1

</llo_original>
